<compile_context>
chip_gen: v7x
topology: tpu7x:2x2x1
jax: 0.10.0
libtpu: 0.0.40
codegen_flags: <defaults>
</compile_context>

<pallas_src>
import jax
import jax.numpy as jnp
from jax.experimental import pallas as pl
from jax.experimental.pallas import tpu as pltpu

# ---- static problem sizes (small, consistent with the module) -------------
H = 16
W = 16
HW = H * W
CIN = 4                      # input channels
CFEAT = 32                   # feature channels of the synthetic "features" conv
NUM_CLASSES = 20             # multi-label classes
KH = KW = 3                  # 3x3 conv, padding=1
KFLAT = KH * KW * CIN        # 36 : flattened im2col contraction dim
C2 = 2 * CFEAT               # 64 : student || teacher fused feature width
NPAD = 128                   # lane-dense per-head width
NHEADS = 4                   # s_bce, s_fc, t_bce, t_fc
NEG_PAD = -1.0e30            # pad-lane bias -> exact-zero KD contributions

TEMPERATURE = 3.0
ALPHA = 1.0


def _log_sigmoid(x):
    # numerically stable log(sigmoid(x)) = min(x, 0) - log1p(exp(-|x|))
    return jnp.minimum(x, 0.0) - jnp.log1p(jnp.exp(-jnp.abs(x)))


def _choose_tb(B):
    if B <= 8:
        return B                       # whole (tiny) batch in one grid step
    assert B % 8 == 0, "this demo kernel expects B % 8 == 0 for B > 8"
    for tb in (32, 24, 16, 8):         # big tiles amortize ~0.35us/step; for
        if B % tb == 0:                # B>=64 this yields nb>=2 (v7x 2 TCs)
            return tb
    raise AssertionError("unreachable")


# ---------------------------------------------------------------------------
# Fused kernel: conv (single bf16 K=36 matmul, student+teacher), batched max
# pool, bias+ReLU on pooled features, one 512-wide fused head matmul, and the
# full KD loss epilogue, per grid step.
# ---------------------------------------------------------------------------
def _build_fused_forward(B):
    TB = _choose_tb(B)
    nb = B // TB
    inv_t = 1.0 / TEMPERATURE
    t_sq = TEMPERATURE * TEMPERATURE

    def kernel(xcol_ref, wconv_ref, bconv_ref, whead_ref, bhead_ref,
               sbce_ref, loss_ref):
        # --- fused student+teacher conv: bf16 (TB*HW, 36) x (36, 64) -------
        feat = jnp.dot(xcol_ref[...], wconv_ref[...],
                       preferred_element_type=jnp.float32)     # (TB*HW, 64) f32

        # --- batched global max pool; bias + ReLU AFTER the pool -----------
        # reshape splits the sublane axis at a multiple-of-8 boundary (HW=256)
        pooled = jnp.max(feat.reshape(TB, HW, C2), axis=1)      # (TB, 64)
        pooled = jnp.maximum(pooled + bconv_ref[...], 0.0)

        # --- one fused head matmul: (TB, 64) x (64, 512), lane-dense -------
        # columns [k*128, (k+1)*128) = head k; "other"-net rows are zero and
        # pad lanes (>= NUM_CLASSES) carry a -1e30 bias.
        logits = (jnp.dot(pooled, whead_ref[...],
                          preferred_element_type=jnp.float32)
                  + bhead_ref[...])                             # (TB, 512)
        s_bce = logits[:, 0 * NPAD:1 * NPAD]
        s_fc = logits[:, 1 * NPAD:2 * NPAD]
        t_bce = logits[:, 2 * NPAD:3 * NPAD]
        t_fc = logits[:, 3 * NPAD:4 * NPAD]

        # lane-dense (TB, 128) store; wrapper slices [:, :NUM_CLASSES]
        sbce_ref[...] = s_bce

        # ---- KD loss epilogue (all f32, per-block partial sum) ------------
        # select_kd: KL(log_softmax(s_fc/T) || softmax(t_fc/T)), 'sum'.
        s = s_fc * inv_t
        t = t_fc * inv_t
        s_max = jnp.max(s, axis=1, keepdims=True)
        t_max = jnp.max(t, axis=1, keepdims=True)
        log_ps = (s - s_max) - jnp.log(
            jnp.sum(jnp.exp(s - s_max), axis=1, keepdims=True))
        log_pt = (t - t_max) - jnp.log(
            jnp.sum(jnp.exp(t - t_max), axis=1, keepdims=True))
        pt = jnp.exp(log_pt)                       # exactly 0 on pad lanes
        sel_sum = jnp.sum(pt * (log_pt - log_ps))  # pad lanes: 0 * finite = 0

        # sigmoid KD terms, both reduction='sum' (per the module spec).
        sb = s_bce * inv_t
        tb = t_bce * inv_t
        ls_s, ls_s_n = _log_sigmoid(sb), _log_sigmoid(-sb)
        ls_t, ls_t_n = _log_sigmoid(tb), _log_sigmoid(-tb)
        q_t = jnp.exp(ls_t)                        # sigmoid(t/T);   0 on pads
        q_t_n = jnp.exp(ls_t_n)                    # 1-sigmoid(t/T); 1 on pads
        kd1_sum = jnp.sum(q_t * (ls_t - ls_s))     # pad lanes contribute 0
        kd2_sum = jnp.sum(q_t_n * (ls_t_n - ls_s_n))

        select_kd = sel_sum * t_sq
        kd_loss = (kd1_sum + kd2_sum) * 0.5 * t_sq / NUM_CLASSES
        partial = (select_kd * ALPHA + kd_loss) * 0.5

        # broadcast partial into the lane-dense (8, 128) slab (unmasked vst);
        # wrapper reads one element per grid step.
        loss_ref[...] = jnp.broadcast_to(partial, loss_ref.shape)

    grid_spec = pltpu.PrefetchScalarGridSpec(
        num_scalar_prefetch=0,
        grid=(nb,),
        in_specs=[
            pl.BlockSpec((TB * HW, KFLAT), lambda b: (b, 0)),      # im2col slab
            pl.BlockSpec((KFLAT, C2), lambda b: (0, 0)),           # fused conv W
            pl.BlockSpec((1, C2), lambda b: (0, 0)),               # fused conv b
            pl.BlockSpec((C2, NHEADS * NPAD), lambda b: (0, 0)),   # fused heads W
            pl.BlockSpec((1, NHEADS * NPAD), lambda b: (0, 0)),    # fused heads b
        ],
        out_specs=[
            pl.BlockSpec((TB, NPAD), lambda b: (b, 0)),            # s_bce (padded)
            pl.BlockSpec((8, NPAD), lambda b: (b, 0)),             # loss partials
        ],
    )
    out_shape = (jax.ShapeDtypeStruct((B, NPAD), jnp.float32),
                 jax.ShapeDtypeStruct((nb * 8, NPAD), jnp.float32))
    return pl.pallas_call(
        kernel,
        out_shape=out_shape,
        grid_spec=grid_spec,
        compiler_params=pltpu.CompilerParams(
            dimension_semantics=("parallel",)),
    )


# ---------------------------------------------------------------------------
# Plain-JAX glue: NCHW -> NHWC, lane-dense bf16 im2col, weight packing.
# ---------------------------------------------------------------------------
def _im2col_flat(x_nhwc):
    """(B, H, W, CIN) -> (B*H*W, KH*KW*CIN), columns (k major, cin minor)."""
    B = x_nhwc.shape[0]
    xp = jnp.pad(x_nhwc, ((0, 0), (1, 1), (1, 1), (0, 0)))
    cols = [xp[:, kh:kh + H, kw:kw + W, :].reshape(B, HW, CIN)
            for kh in range(KH) for kw in range(KW)]
    return jnp.concatenate(cols, axis=-1).reshape(B * HW, KFLAT)


def _pack_params(s_params, t_params):
    s_wconv, s_bconv, s_wbce, s_bbce, s_wfc, s_bfc = s_params
    t_wconv, t_bconv, t_wbce, t_bbce, t_wfc, t_bfc = t_params

    # conv: student || teacher along Cout -> (36, 64); bf16 MXU operands
    wconv = jnp.concatenate([s_wconv.reshape(KFLAT, CFEAT),
                             t_wconv.reshape(KFLAT, CFEAT)],
                            axis=1).astype(jnp.bfloat16)
    bconv = jnp.concatenate([s_bconv, t_bconv], axis=1)            # (1, 64) f32

    # fused heads: (64, 512) weight / (1, 512) bias; head k = lanes [k*128, ...)
    # student heads read rows [0,32), teacher heads rows [32,64); pad lanes of
    # the bias carry -1e30 so they contribute exactly zero to the KD sums.
    whead = jnp.zeros((C2, NHEADS * NPAD), jnp.float32)
    bhead = jnp.full((1, NHEADS * NPAD), NEG_PAD, jnp.float32)
    packing = [(s_wbce, s_bbce, 0),        # 0: student pooling_bce
               (s_wfc, s_bfc, 0),          # 1: student pooling_softmax_fc
               (t_wbce, t_bbce, CFEAT),    # 2: teacher pooling_bce
               (t_wfc, t_bfc, CFEAT)]      # 3: teacher pooling_softmax_fc
    for k, (w, b, r0) in enumerate(packing):
        c0 = k * NPAD
        whead = whead.at[r0:r0 + CFEAT, c0:c0 + NUM_CLASSES].set(w)
        bhead = bhead.at[:, c0:c0 + NUM_CLASSES].set(b)
    return wconv, bconv, whead, bhead


@jax.jit
def selective_fc_kd_forward(x_nchw, target, s_params, t_params):
    del target  # unused in the cls_balance=0 (default) training path
    B = x_nchw.shape[0]
    assert B <= 128
    x_nhwc = jnp.transpose(x_nchw, (0, 2, 3, 1)).astype(jnp.float32)
    xcol = _im2col_flat(x_nhwc).astype(jnp.bfloat16)
    wconv, bconv, whead, bhead = _pack_params(s_params, t_params)

    sbce_pad, loss_slab = _build_fused_forward(B)(xcol, wconv, bconv,
                                                  whead, bhead)
    s_bce_out = sbce_pad[:, :NUM_CLASSES]
    # one partial loss per grid step lives at row b*8, lane 0 of its slab
    loss0 = jnp.sum(loss_slab[::8, 0])
    loss = jnp.zeros((B,), jnp.float32).at[0].set(loss0)
    return s_bce_out, loss


# ---------------------------------------------------------------------------
# Deterministic parameter init for the synthetic student / teacher nets.
# ---------------------------------------------------------------------------
def _init_net(key):
    ks = jax.random.split(key, 6)
    wconv = jax.random.normal(ks[0], (KH * KW, CIN, CFEAT), jnp.float32) * 0.1
    bconv = jax.random.normal(ks[1], (1, CFEAT), jnp.float32) * 0.1
    wbce = jax.random.normal(ks[2], (CFEAT, NUM_CLASSES), jnp.float32) * 0.1
    bbce = jax.random.normal(ks[3], (1, NUM_CLASSES), jnp.float32) * 0.1
    wfc = jax.random.normal(ks[4], (CFEAT, NUM_CLASSES), jnp.float32) * 0.1
    bfc = jax.random.normal(ks[5], (1, NUM_CLASSES), jnp.float32) * 0.1
    return (wconv, bconv, wbce, bbce, wfc, bfc)


if __name__ == "__main__":
    key = jax.random.PRNGKey(0)
    k_x, k_t, k_s, k_teach = jax.random.split(key, 4)

    B = 2
    x = jax.random.normal(k_x, (B, CIN, H, W), jnp.float32)   # NCHW like PyTorch
    target = (jax.random.uniform(k_t, (B, NUM_CLASSES)) > 0.7).astype(jnp.float32)

    s_params = _init_net(k_s)
    t_params = _init_net(k_teach)

    s_bce_out, loss = selective_fc_kd_forward(x, target, s_params, t_params)
    jax.block_until_ready((s_bce_out, loss))

    assert s_bce_out.shape == (B, NUM_CLASSES)
    assert loss.shape == (B,)
    assert bool(jnp.isfinite(loss[0]))
    assert bool(jnp.all(jnp.isfinite(s_bce_out)))
    print("KERNEL_OK")
</pallas_src>

<mosaic_0001>
module attributes {stable_mosaic.version = 11 : i64} {
  func.func @kernel(%arg0: i32, %arg1: memref<512x36xbf16, #tpu.memory_space<vmem>>, %arg2: memref<36x64xbf16, #tpu.memory_space<vmem>>, %arg3: memref<1x64xf32, #tpu.memory_space<vmem>>, %arg4: memref<64x512xf32, #tpu.memory_space<vmem>>, %arg5: memref<1x512xf32, #tpu.memory_space<vmem>>, %arg6: memref<2x128xf32, #tpu.memory_space<vmem>>, %arg7: memref<8x128xf32, #tpu.memory_space<vmem>>) attributes {dimension_semantics = [#tpu.dimension_semantics<parallel>], iteration_bounds = array<i64: 1>, scalar_prefetch = 0 : i64, scratch_operands = 0 : i64, tpu.core_type = #tpu.core_type<tc>, window_params = [{transform_indices = @transform_0, window_bounds = array<i64: 512, 36>}, {pipeline_mode = #tpu.pipeline_mode<synchronous>, transform_indices = @transform_1, window_bounds = array<i64: 36, 64>}, {pipeline_mode = #tpu.pipeline_mode<synchronous>, transform_indices = @transform_2, window_bounds = array<i64: 1, 64>}, {pipeline_mode = #tpu.pipeline_mode<synchronous>, transform_indices = @transform_3, window_bounds = array<i64: 64, 512>}, {pipeline_mode = #tpu.pipeline_mode<synchronous>, transform_indices = @transform_4, window_bounds = array<i64: 1, 512>}, {transform_indices = @transform_5, window_bounds = array<i64: 2, 128>}, {transform_indices = @transform_6, window_bounds = array<i64: 8, 128>}]} {
    %c0 = arith.constant 0 : index
    %c0_0 = arith.constant 0 : index
    %0 = vector.load %arg1[%c0, %c0_0] : memref<512x36xbf16, #tpu.memory_space<vmem>>, vector<512x36xbf16>
    %c0_1 = arith.constant 0 : index
    %c0_2 = arith.constant 0 : index
    %1 = vector.load %arg2[%c0_1, %c0_2] : memref<36x64xbf16, #tpu.memory_space<vmem>>, vector<36x64xbf16>
    %cst = arith.constant dense<0.000000e+00> : vector<512x64xf32>
    %2 = tpu.matmul %0, %1, %cst {dimension_numbers = #tpu.dot_dimension_numbers<[1], [0], [0], [1], [0, 0, 1, 1], [], []>} : vector<512x36xbf16>, vector<36x64xbf16>, vector<512x64xf32> -> vector<512x64xf32>
    %3 = vector.shape_cast %2 : vector<512x64xf32> to vector<2x256x64xf32>
    %cst_3 = arith.constant dense<0xFF800000> : vector<2x64xf32>
    %4 = vector.multi_reduction <maximumf>, %3, %cst_3 [1] : vector<2x256x64xf32> to vector<2x64xf32>
    %c0_4 = arith.constant 0 : index
    %c0_5 = arith.constant 0 : index
    %5 = vector.load %arg3[%c0_4, %c0_5] : memref<1x64xf32, #tpu.memory_space<vmem>>, vector<1x64xf32>
    %6 = vector.broadcast %5 : vector<1x64xf32> to vector<2x64xf32>
    %7 = arith.addf %4, %6 : vector<2x64xf32>
    %cst_6 = arith.constant 0.000000e+00 : f32
    %8 = vector.broadcast %cst_6 : f32 to vector<2x64xf32>
    %9 = arith.maximumf %7, %8 : vector<2x64xf32>
    %c0_7 = arith.constant 0 : index
    %c0_8 = arith.constant 0 : index
    %10 = vector.load %arg4[%c0_7, %c0_8] : memref<64x512xf32, #tpu.memory_space<vmem>>, vector<64x512xf32>
    %cst_9 = arith.constant dense<0.000000e+00> : vector<2x512xf32>
    %11 = tpu.matmul %9, %10, %cst_9 {dimension_numbers = #tpu.dot_dimension_numbers<[1], [0], [0], [1], [0, 0, 1, 1], [], []>} : vector<2x64xf32>, vector<64x512xf32>, vector<2x512xf32> -> vector<2x512xf32>
    %c0_10 = arith.constant 0 : index
    %c0_11 = arith.constant 0 : index
    %12 = vector.load %arg5[%c0_10, %c0_11] : memref<1x512xf32, #tpu.memory_space<vmem>>, vector<1x512xf32>
    %13 = vector.broadcast %12 : vector<1x512xf32> to vector<2x512xf32>
    %14 = arith.addf %11, %13 : vector<2x512xf32>
    %15 = vector.extract_strided_slice %14 {offsets = [0, 0], sizes = [2, 128], strides = [1, 1]} : vector<2x512xf32> to vector<2x128xf32>
    %16 = vector.extract_strided_slice %14 {offsets = [0, 128], sizes = [2, 128], strides = [1, 1]} : vector<2x512xf32> to vector<2x128xf32>
    %17 = vector.extract_strided_slice %14 {offsets = [0, 256], sizes = [2, 128], strides = [1, 1]} : vector<2x512xf32> to vector<2x128xf32>
    %18 = vector.extract_strided_slice %14 {offsets = [0, 384], sizes = [2, 128], strides = [1, 1]} : vector<2x512xf32> to vector<2x128xf32>
    %c0_12 = arith.constant 0 : index
    %c0_13 = arith.constant 0 : index
    %19 = vector.load %arg6[%c0_12, %c0_13] : memref<2x128xf32, #tpu.memory_space<vmem>>, vector<2x128xf32>
    tpu.vector_store %arg6[%c0_12, %c0_13], %15 {strides = array<i32>} : memref<2x128xf32, #tpu.memory_space<vmem>>, vector<2x128xf32>,
    %cst_14 = arith.constant 0.333333343 : f32
    %20 = vector.broadcast %cst_14 : f32 to vector<2x128xf32>
    %21 = arith.mulf %16, %20 : vector<2x128xf32>
    %cst_15 = arith.constant 0.333333343 : f32
    %22 = vector.broadcast %cst_15 : f32 to vector<2x128xf32>
    %23 = arith.mulf %18, %22 : vector<2x128xf32>
    %cst_16 = arith.constant dense<0xFF800000> : vector<2xf32>
    %24 = vector.multi_reduction <maximumf>, %21, %cst_16 [1] : vector<2x128xf32> to vector<2xf32>
    %25 = vector.shape_cast %24 : vector<2xf32> to vector<2x1xf32>
    %cst_17 = arith.constant dense<0xFF800000> : vector<2xf32>
    %26 = vector.multi_reduction <maximumf>, %23, %cst_17 [1] : vector<2x128xf32> to vector<2xf32>
    %27 = vector.shape_cast %26 : vector<2xf32> to vector<2x1xf32>
    %28 = vector.broadcast %25 : vector<2x1xf32> to vector<2x128xf32>
    %29 = arith.subf %21, %28 : vector<2x128xf32>
    %30 = vector.broadcast %25 : vector<2x1xf32> to vector<2x128xf32>
    %31 = arith.subf %21, %30 : vector<2x128xf32>
    %32 = math.exp %31 : vector<2x128xf32>
    %cst_18 = arith.constant dense<0.000000e+00> : vector<2xf32>
    %33 = vector.multi_reduction <add>, %32, %cst_18 [1] : vector<2x128xf32> to vector<2xf32>
    %34 = vector.shape_cast %33 : vector<2xf32> to vector<2x1xf32>
    %35 = math.log %34 : vector<2x1xf32>
    %36 = vector.broadcast %35 : vector<2x1xf32> to vector<2x128xf32>
    %37 = arith.subf %29, %36 : vector<2x128xf32>
    %38 = vector.broadcast %27 : vector<2x1xf32> to vector<2x128xf32>
    %39 = arith.subf %23, %38 : vector<2x128xf32>
    %40 = vector.broadcast %27 : vector<2x1xf32> to vector<2x128xf32>
    %41 = arith.subf %23, %40 : vector<2x128xf32>
    %42 = math.exp %41 : vector<2x128xf32>
    %cst_19 = arith.constant dense<0.000000e+00> : vector<2xf32>
    %43 = vector.multi_reduction <add>, %42, %cst_19 [1] : vector<2x128xf32> to vector<2xf32>
    %44 = vector.shape_cast %43 : vector<2xf32> to vector<2x1xf32>
    %45 = math.log %44 : vector<2x1xf32>
    %46 = vector.broadcast %45 : vector<2x1xf32> to vector<2x128xf32>
    %47 = arith.subf %39, %46 : vector<2x128xf32>
    %48 = math.exp %47 : vector<2x128xf32>
    %49 = arith.subf %47, %37 : vector<2x128xf32>
    %50 = arith.mulf %48, %49 : vector<2x128xf32>
    %51 = vector.shape_cast %50 : vector<2x128xf32> to vector<1x2x128xf32>
    %cst_20 = arith.constant dense<0.000000e+00> : vector<1xf32>
    %52 = vector.multi_reduction <add>, %51, %cst_20 [1, 2] : vector<1x2x128xf32> to vector<1xf32>
    %53 = vector.shape_cast %52 : vector<1xf32> to vector<1x1x1xf32>
    %54 = vector.extract %53[0, 0, 0] : f32 from vector<1x1x1xf32>
    %cst_21 = arith.constant 0.333333343 : f32
    %55 = vector.broadcast %cst_21 : f32 to vector<2x128xf32>
    %56 = arith.mulf %15, %55 : vector<2x128xf32>
    %cst_22 = arith.constant 0.333333343 : f32
    %57 = vector.broadcast %cst_22 : f32 to vector<2x128xf32>
    %58 = arith.mulf %17, %57 : vector<2x128xf32>
    %cst_23 = arith.constant 0.000000e+00 : f32
    %59 = vector.broadcast %cst_23 : f32 to vector<2x128xf32>
    %60 = arith.minimumf %56, %59 : vector<2x128xf32>
    %61 = math.absf %56 : vector<2x128xf32>
    %cst_24 = arith.constant 0.000000e+00 : f32
    %62 = vector.broadcast %cst_24 : f32 to vector<2x128xf32>
    %63 = arith.subf %62, %61 : vector<2x128xf32>
    %64 = math.exp %63 : vector<2x128xf32>
    %65 = math.log1p %64 : vector<2x128xf32>
    %66 = arith.subf %60, %65 : vector<2x128xf32>
    %cst_25 = arith.constant 0.000000e+00 : f32
    %67 = vector.broadcast %cst_25 : f32 to vector<2x128xf32>
    %68 = arith.subf %67, %56 : vector<2x128xf32>
    %cst_26 = arith.constant 0.000000e+00 : f32
    %69 = vector.broadcast %cst_26 : f32 to vector<2x128xf32>
    %70 = arith.minimumf %68, %69 : vector<2x128xf32>
    %71 = math.absf %68 : vector<2x128xf32>
    %cst_27 = arith.constant 0.000000e+00 : f32
    %72 = vector.broadcast %cst_27 : f32 to vector<2x128xf32>
    %73 = arith.subf %72, %71 : vector<2x128xf32>
    %74 = math.exp %73 : vector<2x128xf32>
    %75 = math.log1p %74 : vector<2x128xf32>
    %76 = arith.subf %70, %75 : vector<2x128xf32>
    %cst_28 = arith.constant 0.000000e+00 : f32
    %77 = vector.broadcast %cst_28 : f32 to vector<2x128xf32>
    %78 = arith.minimumf %58, %77 : vector<2x128xf32>
    %79 = math.absf %58 : vector<2x128xf32>
    %cst_29 = arith.constant 0.000000e+00 : f32
    %80 = vector.broadcast %cst_29 : f32 to vector<2x128xf32>
    %81 = arith.subf %80, %79 : vector<2x128xf32>
    %82 = math.exp %81 : vector<2x128xf32>
    %83 = math.log1p %82 : vector<2x128xf32>
    %84 = arith.subf %78, %83 : vector<2x128xf32>
    %cst_30 = arith.constant 0.000000e+00 : f32
    %85 = vector.broadcast %cst_30 : f32 to vector<2x128xf32>
    %86 = arith.subf %85, %58 : vector<2x128xf32>
    %cst_31 = arith.constant 0.000000e+00 : f32
    %87 = vector.broadcast %cst_31 : f32 to vector<2x128xf32>
    %88 = arith.minimumf %86, %87 : vector<2x128xf32>
    %89 = math.absf %86 : vector<2x128xf32>
    %cst_32 = arith.constant 0.000000e+00 : f32
    %90 = vector.broadcast %cst_32 : f32 to vector<2x128xf32>
    %91 = arith.subf %90, %89 : vector<2x128xf32>
    %92 = math.exp %91 : vector<2x128xf32>
    %93 = math.log1p %92 : vector<2x128xf32>
    %94 = arith.subf %88, %93 : vector<2x128xf32>
    %95 = math.exp %84 : vector<2x128xf32>
    %96 = math.exp %94 : vector<2x128xf32>
    %97 = arith.subf %84, %66 : vector<2x128xf32>
    %98 = arith.mulf %95, %97 : vector<2x128xf32>
    %99 = vector.shape_cast %98 : vector<2x128xf32> to vector<1x2x128xf32>
    %cst_33 = arith.constant dense<0.000000e+00> : vector<1xf32>
    %100 = vector.multi_reduction <add>, %99, %cst_33 [1, 2] : vector<1x2x128xf32> to vector<1xf32>
    %101 = vector.shape_cast %100 : vector<1xf32> to vector<1x1x1xf32>
    %102 = vector.extract %101[0, 0, 0] : f32 from vector<1x1x1xf32>
    %103 = arith.subf %94, %76 : vector<2x128xf32>
    %104 = arith.mulf %96, %103 : vector<2x128xf32>
    %105 = vector.shape_cast %104 : vector<2x128xf32> to vector<1x2x128xf32>
    %cst_34 = arith.constant dense<0.000000e+00> : vector<1xf32>
    %106 = vector.multi_reduction <add>, %105, %cst_34 [1, 2] : vector<1x2x128xf32> to vector<1xf32>
    %107 = vector.shape_cast %106 : vector<1xf32> to vector<1x1x1xf32>
    %108 = vector.extract %107[0, 0, 0] : f32 from vector<1x1x1xf32>
    %cst_35 = arith.constant 9.000000e+00 : f32
    %109 = arith.mulf %54, %cst_35 : f32
    %110 = arith.addf %102, %108 : f32
    %cst_36 = arith.constant 5.000000e-01 : f32
    %111 = arith.mulf %110, %cst_36 : f32
    %cst_37 = arith.constant 9.000000e+00 : f32
    %112 = arith.mulf %111, %cst_37 : f32
    %cst_38 = arith.constant 2.000000e+01 : f32
    %113 = arith.divf %112, %cst_38 : f32
    %cst_39 = arith.constant 1.000000e+00 : f32
    %114 = arith.mulf %109, %cst_39 : f32
    %115 = arith.addf %114, %113 : f32
    %cst_40 = arith.constant 5.000000e-01 : f32
    %116 = arith.mulf %115, %cst_40 : f32
    %117 = vector.broadcast %116 : f32 to vector<8x128xf32>
    %c0_41 = arith.constant 0 : index
    %c0_42 = arith.constant 0 : index
    %118 = vector.load %arg7[%c0_41, %c0_42] : memref<8x128xf32, #tpu.memory_space<vmem>>, vector<8x128xf32>
    tpu.vector_store %arg7[%c0_41, %c0_42], %117 {strides = array<i32>} : memref<8x128xf32, #tpu.memory_space<vmem>>, vector<8x128xf32>,
    return
  }
  func.func @transform_0(%arg0: i32) -> (i32, i32) {
    %c0_i32 = arith.constant 0 : i32
    %c0_i32_0 = arith.constant 0 : i32
    return %arg0, %c0_i32 : i32, i32
  }
  func.func @transform_1(%arg0: i32) -> (i32, i32) {
    %c0_i32 = arith.constant 0 : i32
    %c0_i32_0 = arith.constant 0 : i32
    %c0_i32_1 = arith.constant 0 : i32
    return %c0_i32, %c0_i32_0 : i32, i32
  }
  func.func @transform_2(%arg0: i32) -> (i32, i32) {
    %c0_i32 = arith.constant 0 : i32
    %c0_i32_0 = arith.constant 0 : i32
    %c0_i32_1 = arith.constant 0 : i32
    return %c0_i32, %c0_i32_0 : i32, i32
  }
  func.func @transform_3(%arg0: i32) -> (i32, i32) {
    %c0_i32 = arith.constant 0 : i32
    %c0_i32_0 = arith.constant 0 : i32
    %c0_i32_1 = arith.constant 0 : i32
    return %c0_i32, %c0_i32_0 : i32, i32
  }
  func.func @transform_4(%arg0: i32) -> (i32, i32) {
    %c0_i32 = arith.constant 0 : i32
    %c0_i32_0 = arith.constant 0 : i32
    %c0_i32_1 = arith.constant 0 : i32
    return %c0_i32, %c0_i32_0 : i32, i32
  }
  func.func @transform_5(%arg0: i32) -> (i32, i32) {
    %c0_i32 = arith.constant 0 : i32
    %c0_i32_0 = arith.constant 0 : i32
    return %arg0, %c0_i32 : i32, i32
  }
  func.func @transform_6(%arg0: i32) -> (i32, i32) {
    %c0_i32 = arith.constant 0 : i32
    %c0_i32_0 = arith.constant 0 : i32
    return %arg0, %c0_i32 : i32, i32
  }
}

</mosaic_0001>

<llo_original>
// kernel: selective_fc_kd_forward.1
$region0: #{selective_fc_kd_forward.1}
  #allocation0 [shape = 'u32[]', space=smem, size = 0x4, offset = 0x4, fixed_abs, tag = 'smem constant byte address 0x4 - core index']
  #allocation1 [shape = 'u32[144,128]{1,0:T(1,128)}', space=vmem, size = 0x12000, scoped, tag = 'internal scratch']
  %s0 = inlined_call_operand.vmem [shape: bf16[512,36], index: 0, kind: input, shape index: {}]
  %s1 = inlined_call_operand.vmem [shape: bf16[36,64], index: 1, kind: input, shape index: {}]
  %s2 = inlined_call_operand.vmem [shape: f32[1,64], index: 2, kind: input, shape index: {}]
  %s3 = inlined_call_operand.vmem [shape: f32[64,512], index: 3, kind: input, shape index: {}]
  %s4 = inlined_call_operand.vmem [shape: f32[1,512], index: 4, kind: input, shape index: {}]
  %s5 = inlined_call_operand.hbm [shape: f32[2,128], index: 5, kind: output, shape index: {0}]
  %s6 = inlined_call_operand.vmem [shape: f32[8,128], index: 6, kind: output, shape index: {1}]
  %7 = xla_tuple %s5, %s6
  %s8 = sld [smem:[#allocation0]]
  $region38: #{selective_fc_kd_forward.1} parent=0
    _
  %s10 = ssub.s32 1, %s8
  %s11 = scalar_select 0, %s10, %s8
  $region1: #{selective_fc_kd_forward.1} parent=0
    #allocation2 [shape = 'u8[1024]{0}', space=vmem, size = 0x400, scoped, tag = 'output window, operand 0, single buffered']
    #allocation3 [shape = 's32[1]{0}', space=sflag, size = 0x4, scoped, tag = 'scoped memory for selective_fc_kd_forward.1']
    %12 = vsyncpa [#allocation3], 0
    // Predicated region
    $region2: #{selective_fc_kd_forward.1} parent=1 // pred_check
      _
    $region3: #{selective_fc_kd_forward.1} parent=1 // pred_check_branch
      %14 = sbr.rel (0) target = $region5
    $region4: #{selective_fc_kd_forward.1} parent=1 // pred_region
      _
    $region5: #{selective_fc_kd_forward.1} parent=1 // pred_fallthru
      _
    // Predicated region
    $region6: #{selective_fc_kd_forward.1} parent=1 // pred_check
      _
    $region7: #{selective_fc_kd_forward.1} parent=1 // pred_check_branch
      %16 = sbr.rel (0) target = $region9
    $region8: #{selective_fc_kd_forward.1} parent=1 // pred_region
      _
    $region9: #{selective_fc_kd_forward.1} parent=1 // pred_fallthru
      _
    // Predicated region
    $region10: #{selective_fc_kd_forward.1} parent=1 // pred_check
      _
    $region11: #{selective_fc_kd_forward.1} parent=1 // pred_check_branch
      %18 = sbr.rel (0) target = $region13
    $region12: #{selective_fc_kd_forward.1} parent=1 // pred_region
      _
    $region13: #{selective_fc_kd_forward.1} parent=1 // pred_fallthru
      _
    // Predicated region
    $region14: #{selective_fc_kd_forward.1} parent=1 // pred_check
      _
    $region15: #{selective_fc_kd_forward.1} parent=1 // pred_check_branch
      %20 = sbr.rel (0) target = $region17
    $region16: #{selective_fc_kd_forward.1} parent=1 // pred_region
      _
    $region17: #{selective_fc_kd_forward.1} parent=1 // pred_fallthru
      _
    // Predicated region
    $region18: #{selective_fc_kd_forward.1} parent=1 // pred_check
      _
    $region19: #{selective_fc_kd_forward.1} parent=1 // pred_check_branch
      %22 = sbr.rel (0) target = $region21
    $region20: #{selective_fc_kd_forward.1} parent=1 // pred_region
      _
    $region21: #{selective_fc_kd_forward.1} parent=1 // pred_fallthru
      _
    %v24 = vld [vmem:[%s0] sm:$0xf]
    %v25 = vld [vmem:[%s0 + $0x4] sm:$0xf]
    %v26 = vld [vmem:[%s0 + $0x8] sm:$0xf]
    %v27 = vld [vmem:[%s0 + $0xc] sm:$0xf]
    %v28 = vld [vmem:[%s0 + $0x10] sm:$0xf]
    %v29 = vld [vmem:[%s0 + $0x14] sm:$0xf]
    %v30 = vld [vmem:[%s0 + $0x18] sm:$0xf]
    %v31 = vld [vmem:[%s0 + $0x1c] sm:$0xf]
    %v32 = vld [vmem:[%s0 + $0x20] sm:$0xf]
    %v33 = vld [vmem:[%s0 + $0x24] sm:$0xf]
    %v34 = vld [vmem:[%s0 + $0x28] sm:$0xf]
    %v35 = vld [vmem:[%s0 + $0x2c] sm:$0xf]
    %v36 = vld [vmem:[%s0 + $0x30] sm:$0xf]
    %v37 = vld [vmem:[%s0 + $0x34] sm:$0xf]
    %v38 = vld [vmem:[%s0 + $0x38] sm:$0xf]
    %v39 = vld [vmem:[%s0 + $0x3c] sm:$0xf]
    %v40 = vld [vmem:[%s0 + $0x40] sm:$0xf]
    %v41 = vld [vmem:[%s0 + $0x44] sm:$0xf]
    %v42 = vld [vmem:[%s0 + $0x48] sm:$0xf]
    %v43 = vld [vmem:[%s0 + $0x4c] sm:$0xf]
    %v44 = vld [vmem:[%s0 + $0x50] sm:$0xf]
    %v45 = vld [vmem:[%s0 + $0x54] sm:$0xf]
    %v46 = vld [vmem:[%s0 + $0x58] sm:$0xf]
    %v47 = vld [vmem:[%s0 + $0x5c] sm:$0xf]
    %v48 = vld [vmem:[%s0 + $0x60] sm:$0xf]
    %v49 = vld [vmem:[%s0 + $0x64] sm:$0xf]
    %v50 = vld [vmem:[%s0 + $0x68] sm:$0xf]
    %v51 = vld [vmem:[%s0 + $0x6c] sm:$0xf]
    %v52 = vld [vmem:[%s0 + $0x70] sm:$0xf]
    %v53 = vld [vmem:[%s0 + $0x74] sm:$0xf]
    %v54 = vld [vmem:[%s0 + $0x78] sm:$0xf]
    %v55 = vld [vmem:[%s0 + $0x7c] sm:$0xf]
    %v56 = vld [vmem:[%s0 + $0x80] sm:$0xf]
    %v57 = vld [vmem:[%s0 + $0x84] sm:$0xf]
    %v58 = vld [vmem:[%s0 + $0x88] sm:$0xf]
    %v59 = vld [vmem:[%s0 + $0x8c] sm:$0xf]
    %v60 = vld [vmem:[%s0 + $0x90] sm:$0xf]
    %v61 = vld [vmem:[%s0 + $0x94] sm:$0xf]
    %v62 = vld [vmem:[%s0 + $0x98] sm:$0xf]
    %v63 = vld [vmem:[%s0 + $0x9c] sm:$0xf]
    %v64 = vld [vmem:[%s0 + $0xa0] sm:$0xf]
    %v65 = vld [vmem:[%s0 + $0xa4] sm:$0xf]
    %v66 = vld [vmem:[%s0 + $0xa8] sm:$0xf]
    %v67 = vld [vmem:[%s0 + $0xac] sm:$0xf]
    %v68 = vld [vmem:[%s0 + $0xb0] sm:$0xf]
    %v69 = vld [vmem:[%s0 + $0xb4] sm:$0xf]
    %v70 = vld [vmem:[%s0 + $0xb8] sm:$0xf]
    %v71 = vld [vmem:[%s0 + $0xbc] sm:$0xf]
    %v72 = vld [vmem:[%s0 + $0xc0] sm:$0xf]
    %v73 = vld [vmem:[%s0 + $0xc4] sm:$0xf]
    %v74 = vld [vmem:[%s0 + $0xc8] sm:$0xf]
    %v75 = vld [vmem:[%s0 + $0xcc] sm:$0xf]
    %v76 = vld [vmem:[%s0 + $0xd0] sm:$0xf]
    %v77 = vld [vmem:[%s0 + $0xd4] sm:$0xf]
    %v78 = vld [vmem:[%s0 + $0xd8] sm:$0xf]
    %v79 = vld [vmem:[%s0 + $0xdc] sm:$0xf]
    %v80 = vld [vmem:[%s0 + $0xe0] sm:$0xf]
    %v81 = vld [vmem:[%s0 + $0xe4] sm:$0xf]
    %v82 = vld [vmem:[%s0 + $0xe8] sm:$0xf]
    %v83 = vld [vmem:[%s0 + $0xec] sm:$0xf]
    %v84 = vld [vmem:[%s0 + $0xf0] sm:$0xf]
    %v85 = vld [vmem:[%s0 + $0xf4] sm:$0xf]
    %v86 = vld [vmem:[%s0 + $0xf8] sm:$0xf]
    %v87 = vld [vmem:[%s0 + $0xfc] sm:$0xf]
    %v88 = vld [vmem:[%s1] sm:$0xf]
    %v89 = vld [vmem:[%s1 + $0x4] sm:$0xf]
    %v90 = vld [vmem:[%s1 + $0x8] sm:$0xf]
    %v91 = vld [vmem:[%s1 + $0xc] sm:$0xf]
    %v92 = vld [vmem:[%s1 + $0x10] sm:$0x3]
    %v157 = vunpack.c.l.b16 %v24
    %v158 = vunpack.c.l.b16 %v25
    %v159 = vunpack.c.l.b16 %v26
    %v160 = vunpack.c.l.b16 %v27
    %v161 = vunpack.c.l.b16 %v28
    %v162 = vunpack.c.l.b16 %v29
    %v163 = vunpack.c.l.b16 %v30
    %v164 = vunpack.c.l.b16 %v31
    %v165 = vunpack.c.l.b16 %v32
    %v166 = vunpack.c.l.b16 %v33
    %v167 = vunpack.c.l.b16 %v34
    %v168 = vunpack.c.l.b16 %v35
    %v169 = vunpack.c.l.b16 %v36
    %v170 = vunpack.c.l.b16 %v37
    %v171 = vunpack.c.l.b16 %v38
    %v172 = vunpack.c.l.b16 %v39
    %v173 = vunpack.c.l.b16 %v40
    %v174 = vunpack.c.l.b16 %v41
    %v175 = vunpack.c.l.b16 %v42
    %v176 = vunpack.c.l.b16 %v43
    %v177 = vunpack.c.l.b16 %v44
    %v178 = vunpack.c.l.b16 %v45
    %v179 = vunpack.c.l.b16 %v46
    %v180 = vunpack.c.l.b16 %v47
    %v181 = vunpack.c.l.b16 %v48
    %v182 = vunpack.c.l.b16 %v49
    %v183 = vunpack.c.l.b16 %v50
    %v184 = vunpack.c.l.b16 %v51
    %v185 = vunpack.c.l.b16 %v52
    %v186 = vunpack.c.l.b16 %v53
    %v187 = vunpack.c.l.b16 %v54
    %v188 = vunpack.c.l.b16 %v55
    %v189 = vunpack.c.l.b16 %v56
    %v190 = vunpack.c.l.b16 %v57
    %v191 = vunpack.c.l.b16 %v58
    %v192 = vunpack.c.l.b16 %v59
    %v193 = vunpack.c.l.b16 %v60
    %v194 = vunpack.c.l.b16 %v61
    %v195 = vunpack.c.l.b16 %v62
    %v196 = vunpack.c.l.b16 %v63
    %v197 = vunpack.c.l.b16 %v64
    %v198 = vunpack.c.l.b16 %v65
    %v199 = vunpack.c.l.b16 %v66
    %v200 = vunpack.c.l.b16 %v67
    %v201 = vunpack.c.l.b16 %v68
    %v202 = vunpack.c.l.b16 %v69
    %v203 = vunpack.c.l.b16 %v70
    %v204 = vunpack.c.l.b16 %v71
    %v205 = vunpack.c.l.b16 %v72
    %v206 = vunpack.c.l.b16 %v73
    %v207 = vunpack.c.l.b16 %v74
    %v208 = vunpack.c.l.b16 %v75
    %v209 = vunpack.c.l.b16 %v76
    %v210 = vunpack.c.l.b16 %v77
    %v211 = vunpack.c.l.b16 %v78
    %v212 = vunpack.c.l.b16 %v79
    %v213 = vunpack.c.l.b16 %v80
    %v214 = vunpack.c.l.b16 %v81
    %v215 = vunpack.c.l.b16 %v82
    %v216 = vunpack.c.l.b16 %v83
    %v217 = vunpack.c.l.b16 %v84
    %v218 = vunpack.c.l.b16 %v85
    %v219 = vunpack.c.l.b16 %v86
    %v220 = vunpack.c.l.b16 %v87
    %v221 = vpack.c.b16 %v158, %v157
    %v222 = vpack.c.b16 %v160, %v159
    %v223 = vpack.c.b16 %v162, %v161
    %v224 = vpack.c.b16 %v164, %v163
    %v225 = vpack.c.b16 %v166, %v165
    %v226 = vpack.c.b16 %v168, %v167
    %v227 = vpack.c.b16 %v170, %v169
    %v228 = vpack.c.b16 %v172, %v171
    %v229 = vpack.c.b16 %v174, %v173
    %v230 = vpack.c.b16 %v176, %v175
    %v231 = vpack.c.b16 %v178, %v177
    %v232 = vpack.c.b16 %v180, %v179
    %v233 = vpack.c.b16 %v182, %v181
    %v234 = vpack.c.b16 %v184, %v183
    %v235 = vpack.c.b16 %v186, %v185
    %v236 = vpack.c.b16 %v188, %v187
    %v237 = vpack.c.b16 %v190, %v189
    %v238 = vpack.c.b16 %v192, %v191
    %v239 = vpack.c.b16 %v194, %v193
    %v240 = vpack.c.b16 %v196, %v195
    %v241 = vpack.c.b16 %v198, %v197
    %v242 = vpack.c.b16 %v200, %v199
    %v243 = vpack.c.b16 %v202, %v201
    %v244 = vpack.c.b16 %v204, %v203
    %v245 = vpack.c.b16 %v206, %v205
    %v246 = vpack.c.b16 %v208, %v207
    %v247 = vpack.c.b16 %v210, %v209
    %v248 = vpack.c.b16 %v212, %v211
    %v249 = vpack.c.b16 %v214, %v213
    %v250 = vpack.c.b16 %v216, %v215
    %v251 = vpack.c.b16 %v218, %v217
    %v252 = vpack.c.b16 %v220, %v219
    %v258 = vunpack.c.l.b16 %v88
    %v259 = vunpack.c.l.b16 %v89
    %v260 = vunpack.c.l.b16 %v90
    %v261 = vunpack.c.l.b16 %v91
    %v262 = vunpack.c.l.b16 %v92
    %v263 = vpack.c.b16 %v259, %v258
    %v264 = vpack.c.b16 %v261, %v260
    %v265 = vpack.c.b16 %v262, %v262
    %vm268 = vcmask 293888
    %v270 = vsel %vm268, %v221, 0
    %v273 = vsel %vm268, %v222, 0
    %v276 = vsel %vm268, %v223, 0
    %v279 = vsel %vm268, %v224, 0
    %v282 = vsel %vm268, %v225, 0
    %v285 = vsel %vm268, %v226, 0
    %v288 = vsel %vm268, %v227, 0
    %v291 = vsel %vm268, %v228, 0
    %v294 = vsel %vm268, %v229, 0
    %v297 = vsel %vm268, %v230, 0
    %v300 = vsel %vm268, %v231, 0
    %v303 = vsel %vm268, %v232, 0
    %v306 = vsel %vm268, %v233, 0
    %v309 = vsel %vm268, %v234, 0
    %v312 = vsel %vm268, %v235, 0
    %v315 = vsel %vm268, %v236, 0
    %v318 = vsel %vm268, %v237, 0
    %v321 = vsel %vm268, %v238, 0
    %v324 = vsel %vm268, %v239, 0
    %v327 = vsel %vm268, %v240, 0
    %v330 = vsel %vm268, %v241, 0
    %v333 = vsel %vm268, %v242, 0
    %v336 = vsel %vm268, %v243, 0
    %v339 = vsel %vm268, %v244, 0
    %v342 = vsel %vm268, %v245, 0
    %v345 = vsel %vm268, %v246, 0
    %v348 = vsel %vm268, %v247, 0
    %v351 = vsel %vm268, %v248, 0
    %v354 = vsel %vm268, %v249, 0
    %v357 = vsel %vm268, %v250, 0
    %v360 = vsel %vm268, %v251, 0
    %v363 = vsel %vm268, %v252, 0
    %vm365 = vcmask 1041408
    %v367 = vsel %vm365, %v265, 0
    %369 = vmatprep.subr.bf16.mxu0 0
    %370 = vmatpush1.bf16.msra.mxu0 %v263
    %371 = vmatprep.subr.bf16.mxu0 0
    %372 = vmatpush1.bf16.msra.mxu0 %v264
    %373 = vmatprep.subr.bf16.mxu0 0
    %374 = vmatpush1.bf16.msra.mxu0 %v367
    %375 = vmatprep.subr.bf16.mxu0 0
    %376 = vmatpush1.bf16.msra.mxu0 0
    %377 = vmatprep.subr.bf16.mxu0 0
    %378 = vmatpush1.bf16.msra.mxu0 0
    %379 = vmatprep.subr.bf16.mxu0 0
    %380 = vmatpush1.bf16.msra.mxu0 0
    %381 = vmatprep.subr.bf16.mxu0 0
    %382 = vmatpush1.bf16.msra.mxu0 0
    %383 = vmatprep.subr.bf16.mxu0 0
    %384 = vmatpush1.bf16.msra.mxu0 0
    %385 = vmatprep.subr.bf16.mxu0 0
    %386 = vmatpush1.bf16.msra.mxu0 0
    %387 = vmatprep.subr.bf16.mxu0 0
    %388 = vmatpush1.bf16.msra.mxu0 0
    %389 = vmatprep.subr.bf16.mxu0 0
    %390 = vmatpush1.bf16.msra.mxu0 0
    %391 = vmatprep.subr.bf16.mxu0 0
    %392 = vmatpush1.bf16.msra.mxu0 0
    %393 = vmatprep.subr.bf16.mxu0 0
    %394 = vmatpush1.bf16.msra.mxu0 0
    %395 = vmatprep.subr.bf16.mxu0 0
    %396 = vmatpush1.bf16.msra.mxu0 0
    %397 = vmatprep.subr.bf16.mxu0 0
    %398 = vmatpush1.bf16.msra.mxu0 0
    %399 = vmatprep.subr.bf16.mxu0 0
    %400 = vmatpush1.bf16.msra.mxu0 0
    %401 = vmatprep.mubr.bf16.mxu0 0
    %402 = vmatmul.mubr.bf16.gmra.mrb[0].mxu0 %v270
    %v403 = vpop.f32.mrb[0].mxu0
    %v404 = vadd.f32 0.0, %v403
    %v405 = vpop.f32.mrb[0].mxu0
    %v406 = vpop.f32.mrb[0].mxu0
    %v407 = vadd.f32 0.0, %v406
    %v408 = vpop.f32.mrb[0].mxu0
    %409 = vmatprep.mubr.bf16.mxu0 0
    %410 = vmatmul.mubr.bf16.gmra.mrb[0].mxu0 %v273
    %v411 = vpop.f32.mrb[0].mxu0
    %v412 = vadd.f32 0.0, %v411
    %v413 = vpop.f32.mrb[0].mxu0
    %v414 = vpop.f32.mrb[0].mxu0
    %v415 = vadd.f32 0.0, %v414
    %v416 = vpop.f32.mrb[0].mxu0
    %417 = vmatprep.mubr.bf16.mxu0 0
    %418 = vmatmul.mubr.bf16.gmra.mrb[0].mxu0 %v276
    %v419 = vpop.f32.mrb[0].mxu0
    %v420 = vadd.f32 0.0, %v419
    %v421 = vpop.f32.mrb[0].mxu0
    %v422 = vpop.f32.mrb[0].mxu0
    %v423 = vadd.f32 0.0, %v422
    %v424 = vpop.f32.mrb[0].mxu0
    %425 = vmatprep.mubr.bf16.mxu0 0
    %426 = vmatmul.mubr.bf16.gmra.mrb[0].mxu0 %v279
    %v427 = vpop.f32.mrb[0].mxu0
    %v428 = vadd.f32 0.0, %v427
    %v429 = vpop.f32.mrb[0].mxu0
    %v430 = vpop.f32.mrb[0].mxu0
    %v431 = vadd.f32 0.0, %v430
    %v432 = vpop.f32.mrb[0].mxu0
    %433 = vmatprep.mubr.bf16.mxu0 0
    %434 = vmatmul.mubr.bf16.gmra.mrb[0].mxu0 %v282
    %v435 = vpop.f32.mrb[0].mxu0
    %v436 = vadd.f32 0.0, %v435
    %v437 = vpop.f32.mrb[0].mxu0
    %v438 = vpop.f32.mrb[0].mxu0
    %v439 = vadd.f32 0.0, %v438
    %v440 = vpop.f32.mrb[0].mxu0
    %441 = vmatprep.mubr.bf16.mxu0 0
    %442 = vmatmul.mubr.bf16.gmra.mrb[0].mxu0 %v285
    %v443 = vpop.f32.mrb[0].mxu0
    %v444 = vadd.f32 0.0, %v443
    %v445 = vpop.f32.mrb[0].mxu0
    %v446 = vpop.f32.mrb[0].mxu0
    %v447 = vadd.f32 0.0, %v446
    %v448 = vpop.f32.mrb[0].mxu0
    %449 = vmatprep.mubr.bf16.mxu0 0
    %450 = vmatmul.mubr.bf16.gmra.mrb[0].mxu0 %v288
    %v451 = vpop.f32.mrb[0].mxu0
    %v452 = vadd.f32 0.0, %v451
    %v453 = vpop.f32.mrb[0].mxu0
    %v454 = vpop.f32.mrb[0].mxu0
    %v455 = vadd.f32 0.0, %v454
    %v456 = vpop.f32.mrb[0].mxu0
    %457 = vmatprep.mubr.bf16.mxu0 0
    %458 = vmatmul.mubr.bf16.gmra.mrb[0].mxu0 %v291
    %v459 = vpop.f32.mrb[0].mxu0
    %v460 = vadd.f32 0.0, %v459
    %v461 = vpop.f32.mrb[0].mxu0
    %v462 = vpop.f32.mrb[0].mxu0
    %v463 = vadd.f32 0.0, %v462
    %v464 = vpop.f32.mrb[0].mxu0
    %465 = vmatprep.mubr.bf16.mxu0 0
    %466 = vmatmul.mubr.bf16.gmra.mrb[0].mxu0 %v294
    %v467 = vpop.f32.mrb[0].mxu0
    %v468 = vadd.f32 0.0, %v467
    %v469 = vpop.f32.mrb[0].mxu0
    %v470 = vpop.f32.mrb[0].mxu0
    %v471 = vadd.f32 0.0, %v470
    %v472 = vpop.f32.mrb[0].mxu0
    %473 = vmatprep.mubr.bf16.mxu0 0
    %474 = vmatmul.mubr.bf16.gmra.mrb[0].mxu0 %v297
    %v475 = vpop.f32.mrb[0].mxu0
    %v476 = vadd.f32 0.0, %v475
    %v477 = vpop.f32.mrb[0].mxu0
    %v478 = vpop.f32.mrb[0].mxu0
    %v479 = vadd.f32 0.0, %v478
    %v480 = vpop.f32.mrb[0].mxu0
    %481 = vmatprep.mubr.bf16.mxu0 0
    %482 = vmatmul.mubr.bf16.gmra.mrb[0].mxu0 %v300
    %v483 = vpop.f32.mrb[0].mxu0
    %v484 = vadd.f32 0.0, %v483
    %v485 = vpop.f32.mrb[0].mxu0
    %v486 = vpop.f32.mrb[0].mxu0
    %v487 = vadd.f32 0.0, %v486
    %v488 = vpop.f32.mrb[0].mxu0
    %489 = vmatprep.mubr.bf16.mxu0 0
    %490 = vmatmul.mubr.bf16.gmra.mrb[0].mxu0 %v303
    %v491 = vpop.f32.mrb[0].mxu0
    %v492 = vadd.f32 0.0, %v491
    %v493 = vpop.f32.mrb[0].mxu0
    %v494 = vpop.f32.mrb[0].mxu0
    %v495 = vadd.f32 0.0, %v494
    %v496 = vpop.f32.mrb[0].mxu0
    %497 = vmatprep.mubr.bf16.mxu0 0
    %498 = vmatmul.mubr.bf16.gmra.mrb[0].mxu0 %v306
    %v499 = vpop.f32.mrb[0].mxu0
    %v500 = vadd.f32 0.0, %v499
    %v501 = vpop.f32.mrb[0].mxu0
    %v502 = vpop.f32.mrb[0].mxu0
    %v503 = vadd.f32 0.0, %v502
    %v504 = vpop.f32.mrb[0].mxu0
    %505 = vmatprep.mubr.bf16.mxu0 0
    %506 = vmatmul.mubr.bf16.gmra.mrb[0].mxu0 %v309
    %v507 = vpop.f32.mrb[0].mxu0
    %v508 = vadd.f32 0.0, %v507
    %v509 = vpop.f32.mrb[0].mxu0
    %v510 = vpop.f32.mrb[0].mxu0
    %v511 = vadd.f32 0.0, %v510
    %v512 = vpop.f32.mrb[0].mxu0
    %513 = vmatprep.mubr.bf16.mxu0 0
    %514 = vmatmul.mubr.bf16.gmra.mrb[0].mxu0 %v312
    %v515 = vpop.f32.mrb[0].mxu0
    %v516 = vadd.f32 0.0, %v515
    %v517 = vpop.f32.mrb[0].mxu0
    %v518 = vpop.f32.mrb[0].mxu0
    %v519 = vadd.f32 0.0, %v518
    %v520 = vpop.f32.mrb[0].mxu0
    %521 = vmatprep.mubr.bf16.mxu0 0
    %522 = vmatmul.mubr.bf16.gmra.mrb[0].mxu0 %v315
    %v523 = vpop.f32.mrb[0].mxu0
    %v524 = vadd.f32 0.0, %v523
    %v525 = vpop.f32.mrb[0].mxu0
    %v526 = vpop.f32.mrb[0].mxu0
    %v527 = vadd.f32 0.0, %v526
    %v528 = vpop.f32.mrb[0].mxu0
    %529 = vmatprep.mubr.bf16.mxu0 0
    %530 = vmatmul.mubr.bf16.gmra.mrb[0].mxu0 %v318
    %v531 = vpop.f32.mrb[0].mxu0
    %v532 = vadd.f32 0.0, %v531
    %v533 = vpop.f32.mrb[0].mxu0
    %v534 = vpop.f32.mrb[0].mxu0
    %v535 = vadd.f32 0.0, %v534
    %v536 = vpop.f32.mrb[0].mxu0
    %537 = vmatprep.mubr.bf16.mxu0 0
    %538 = vmatmul.mubr.bf16.gmra.mrb[0].mxu0 %v321
    %v539 = vpop.f32.mrb[0].mxu0
    %v540 = vadd.f32 0.0, %v539
    %v541 = vpop.f32.mrb[0].mxu0
    %v542 = vpop.f32.mrb[0].mxu0
    %v543 = vadd.f32 0.0, %v542
    %v544 = vpop.f32.mrb[0].mxu0
    %545 = vmatprep.mubr.bf16.mxu0 0
    %546 = vmatmul.mubr.bf16.gmra.mrb[0].mxu0 %v324
    %v547 = vpop.f32.mrb[0].mxu0
    %v548 = vadd.f32 0.0, %v547
    %v549 = vpop.f32.mrb[0].mxu0
    %v550 = vpop.f32.mrb[0].mxu0
    %v551 = vadd.f32 0.0, %v550
    %v552 = vpop.f32.mrb[0].mxu0
    %553 = vmatprep.mubr.bf16.mxu0 0
    %554 = vmatmul.mubr.bf16.gmra.mrb[0].mxu0 %v327
    %v555 = vpop.f32.mrb[0].mxu0
    %v556 = vadd.f32 0.0, %v555
    %v557 = vpop.f32.mrb[0].mxu0
    %v558 = vpop.f32.mrb[0].mxu0
    %v559 = vadd.f32 0.0, %v558
    %v560 = vpop.f32.mrb[0].mxu0
    %561 = vmatprep.mubr.bf16.mxu0 0
    %562 = vmatmul.mubr.bf16.gmra.mrb[0].mxu0 %v330
    %v563 = vpop.f32.mrb[0].mxu0
    %v564 = vadd.f32 0.0, %v563
    %v565 = vpop.f32.mrb[0].mxu0
    %v566 = vpop.f32.mrb[0].mxu0
    %v567 = vadd.f32 0.0, %v566
    %v568 = vpop.f32.mrb[0].mxu0
    %569 = vmatprep.mubr.bf16.mxu0 0
    %570 = vmatmul.mubr.bf16.gmra.mrb[0].mxu0 %v333
    %v571 = vpop.f32.mrb[0].mxu0
    %v572 = vadd.f32 0.0, %v571
    %v573 = vpop.f32.mrb[0].mxu0
    %v574 = vpop.f32.mrb[0].mxu0
    %v575 = vadd.f32 0.0, %v574
    %v576 = vpop.f32.mrb[0].mxu0
    %577 = vmatprep.mubr.bf16.mxu0 0
    %578 = vmatmul.mubr.bf16.gmra.mrb[0].mxu0 %v336
    %v579 = vpop.f32.mrb[0].mxu0
    %v580 = vadd.f32 0.0, %v579
    %v581 = vpop.f32.mrb[0].mxu0
    %v582 = vpop.f32.mrb[0].mxu0
    %v583 = vadd.f32 0.0, %v582
    %v584 = vpop.f32.mrb[0].mxu0
    %585 = vmatprep.mubr.bf16.mxu0 0
    %586 = vmatmul.mubr.bf16.gmra.mrb[0].mxu0 %v339
    %v587 = vpop.f32.mrb[0].mxu0
    %v588 = vadd.f32 0.0, %v587
    %v589 = vpop.f32.mrb[0].mxu0
    %v590 = vpop.f32.mrb[0].mxu0
    %v591 = vadd.f32 0.0, %v590
    %v592 = vpop.f32.mrb[0].mxu0
    %593 = vmatprep.mubr.bf16.mxu0 0
    %594 = vmatmul.mubr.bf16.gmra.mrb[0].mxu0 %v342
    %v595 = vpop.f32.mrb[0].mxu0
    %v596 = vadd.f32 0.0, %v595
    %v597 = vpop.f32.mrb[0].mxu0
    %v598 = vpop.f32.mrb[0].mxu0
    %v599 = vadd.f32 0.0, %v598
    %v600 = vpop.f32.mrb[0].mxu0
    %601 = vmatprep.mubr.bf16.mxu0 0
    %602 = vmatmul.mubr.bf16.gmra.mrb[0].mxu0 %v345
    %v603 = vpop.f32.mrb[0].mxu0
    %v604 = vadd.f32 0.0, %v603
    %v605 = vpop.f32.mrb[0].mxu0
    %v606 = vpop.f32.mrb[0].mxu0
    %v607 = vadd.f32 0.0, %v606
    %v608 = vpop.f32.mrb[0].mxu0
    %609 = vmatprep.mubr.bf16.mxu0 0
    %610 = vmatmul.mubr.bf16.gmra.mrb[0].mxu0 %v348
    %v611 = vpop.f32.mrb[0].mxu0
    %v612 = vadd.f32 0.0, %v611
    %v613 = vpop.f32.mrb[0].mxu0
    %v614 = vpop.f32.mrb[0].mxu0
    %v615 = vadd.f32 0.0, %v614
    %v616 = vpop.f32.mrb[0].mxu0
    %617 = vmatprep.mubr.bf16.mxu0 0
    %618 = vmatmul.mubr.bf16.gmra.mrb[0].mxu0 %v351
    %v619 = vpop.f32.mrb[0].mxu0
    %v620 = vadd.f32 0.0, %v619
    %v621 = vpop.f32.mrb[0].mxu0
    %v622 = vpop.f32.mrb[0].mxu0
    %v623 = vadd.f32 0.0, %v622
    %v624 = vpop.f32.mrb[0].mxu0
    %625 = vmatprep.mubr.bf16.mxu0 0
    %626 = vmatmul.mubr.bf16.gmra.mrb[0].mxu0 %v354
    %v627 = vpop.f32.mrb[0].mxu0
    %v628 = vadd.f32 0.0, %v627
    %v629 = vpop.f32.mrb[0].mxu0
    %v630 = vpop.f32.mrb[0].mxu0
    %v631 = vadd.f32 0.0, %v630
    %v632 = vpop.f32.mrb[0].mxu0
    %633 = vmatprep.mubr.bf16.mxu0 0
    %634 = vmatmul.mubr.bf16.gmra.mrb[0].mxu0 %v357
    %v635 = vpop.f32.mrb[0].mxu0
    %v636 = vadd.f32 0.0, %v635
    %v637 = vpop.f32.mrb[0].mxu0
    %v638 = vpop.f32.mrb[0].mxu0
    %v639 = vadd.f32 0.0, %v638
    %v640 = vpop.f32.mrb[0].mxu0
    %641 = vmatprep.mubr.bf16.mxu0 0
    %642 = vmatmul.mubr.bf16.gmra.mrb[0].mxu0 %v360
    %v643 = vpop.f32.mrb[0].mxu0
    %v644 = vadd.f32 0.0, %v643
    %v645 = vpop.f32.mrb[0].mxu0
    %v646 = vpop.f32.mrb[0].mxu0
    %v647 = vadd.f32 0.0, %v646
    %v648 = vpop.f32.mrb[0].mxu0
    %649 = vmatprep.mubr.bf16.mxu0 0
    %650 = vmatmul.mubr.bf16.gmra.mrb[0].mxu0 %v363
    %v651 = vpop.f32.mrb[0].mxu0
    %v652 = vadd.f32 0.0, %v651
    %v653 = vpop.f32.mrb[0].mxu0
    %v654 = vpop.f32.mrb[0].mxu0
    %v655 = vadd.f32 0.0, %v654
    %v656 = vpop.f32.mrb[0].mxu0
    %657 = vdwg.mxu0
    %vm658 = vcmask 523264
    %v659 = vsel %vm658, %v404, -inf
    %v660 = vsel %vm658, %v407, -inf
    %v661 = vsel %vm658, %v412, -inf
    %v662 = vmax.f32 %v659, %v661
    %v663 = vsel %vm658, %v415, -inf
    %v664 = vmax.f32 %v660, %v663
    %v665 = vsel %vm658, %v420, -inf
    %v666 = vmax.f32 %v662, %v665
    %v667 = vsel %vm658, %v423, -inf
    %v668 = vmax.f32 %v664, %v667
    %v669 = vsel %vm658, %v428, -inf
    %v670 = vmax.f32 %v666, %v669
    %v671 = vsel %vm658, %v431, -inf
    %v672 = vmax.f32 %v668, %v671
    %v673 = vsel %vm658, %v436, -inf
    %v674 = vmax.f32 %v670, %v673
    %v675 = vsel %vm658, %v439, -inf
    %v676 = vmax.f32 %v672, %v675
    %v677 = vsel %vm658, %v444, -inf
    %v678 = vmax.f32 %v674, %v677
    %v679 = vsel %vm658, %v447, -inf
    %v680 = vmax.f32 %v676, %v679
    %v681 = vsel %vm658, %v452, -inf
    %v682 = vmax.f32 %v678, %v681
    %v683 = vsel %vm658, %v455, -inf
    %v684 = vmax.f32 %v680, %v683
    %v685 = vsel %vm658, %v460, -inf
    %v686 = vmax.f32 %v682, %v685
    %v687 = vsel %vm658, %v463, -inf
    %v688 = vmax.f32 %v684, %v687
    %v689 = vsel %vm658, %v468, -inf
    %v690 = vmax.f32 %v686, %v689
    %v691 = vsel %vm658, %v471, -inf
    %v692 = vmax.f32 %v688, %v691
    %v693 = vsel %vm658, %v476, -inf
    %v694 = vmax.f32 %v690, %v693
    %v695 = vsel %vm658, %v479, -inf
    %v696 = vmax.f32 %v692, %v695
    %v697 = vsel %vm658, %v484, -inf
    %v698 = vmax.f32 %v694, %v697
    %v699 = vsel %vm658, %v487, -inf
    %v700 = vmax.f32 %v696, %v699
    %v701 = vsel %vm658, %v492, -inf
    %v702 = vmax.f32 %v698, %v701
    %v703 = vsel %vm658, %v495, -inf
    %v704 = vmax.f32 %v700, %v703
    %v705 = vsel %vm658, %v500, -inf
    %v706 = vmax.f32 %v702, %v705
    %v707 = vsel %vm658, %v503, -inf
    %v708 = vmax.f32 %v704, %v707
    %v709 = vsel %vm658, %v508, -inf
    %v710 = vmax.f32 %v706, %v709
    %v711 = vsel %vm658, %v511, -inf
    %v712 = vmax.f32 %v708, %v711
    %v713 = vsel %vm658, %v516, -inf
    %v714 = vmax.f32 %v710, %v713
    %v715 = vsel %vm658, %v519, -inf
    %v716 = vmax.f32 %v712, %v715
    %v717 = vsel %vm658, %v524, -inf
    %v718 = vmax.f32 %v714, %v717
    %v719 = vsel %vm658, %v527, -inf
    %v720 = vmax.f32 %v716, %v719
    %v721 = vmax.f32 %v718, %v720
    %v722 = vrot.slane %v721, 4
    %v723 = vmax.f32 %v721, %v722
    %v724 = vrot.slane %v723, 2
    %v725 = vmax.f32 %v723, %v724
    %v726 = vrot.slane %v725, 1
    %v727 = vmax.f32 %v725, %v726
    %v728 = vsel %vm658, %v532, -inf
    %v729 = vsel %vm658, %v535, -inf
    %v730 = vsel %vm658, %v540, -inf
    %v731 = vmax.f32 %v728, %v730
    %v732 = vsel %vm658, %v543, -inf
    %v733 = vmax.f32 %v729, %v732
    %v734 = vsel %vm658, %v548, -inf
    %v735 = vmax.f32 %v731, %v734
    %v736 = vsel %vm658, %v551, -inf
    %v737 = vmax.f32 %v733, %v736
    %v738 = vsel %vm658, %v556, -inf
    %v739 = vmax.f32 %v735, %v738
    %v740 = vsel %vm658, %v559, -inf
    %v741 = vmax.f32 %v737, %v740
    %v742 = vsel %vm658, %v564, -inf
    %v743 = vmax.f32 %v739, %v742
    %v744 = vsel %vm658, %v567, -inf
    %v745 = vmax.f32 %v741, %v744
    %v746 = vsel %vm658, %v572, -inf
    %v747 = vmax.f32 %v743, %v746
    %v748 = vsel %vm658, %v575, -inf
    %v749 = vmax.f32 %v745, %v748
    %v750 = vsel %vm658, %v580, -inf
    %v751 = vmax.f32 %v747, %v750
    %v752 = vsel %vm658, %v583, -inf
    %v753 = vmax.f32 %v749, %v752
    %v754 = vsel %vm658, %v588, -inf
    %v755 = vmax.f32 %v751, %v754
    %v756 = vsel %vm658, %v591, -inf
    %v757 = vmax.f32 %v753, %v756
    %v758 = vsel %vm658, %v596, -inf
    %v759 = vmax.f32 %v755, %v758
    %v760 = vsel %vm658, %v599, -inf
    %v761 = vmax.f32 %v757, %v760
    %v762 = vsel %vm658, %v604, -inf
    %v763 = vmax.f32 %v759, %v762
    %v764 = vsel %vm658, %v607, -inf
    %v765 = vmax.f32 %v761, %v764
    %v766 = vsel %vm658, %v612, -inf
    %v767 = vmax.f32 %v763, %v766
    %v768 = vsel %vm658, %v615, -inf
    %v769 = vmax.f32 %v765, %v768
    %v770 = vsel %vm658, %v620, -inf
    %v771 = vmax.f32 %v767, %v770
    %v772 = vsel %vm658, %v623, -inf
    %v773 = vmax.f32 %v769, %v772
    %v774 = vsel %vm658, %v628, -inf
    %v775 = vmax.f32 %v771, %v774
    %v776 = vsel %vm658, %v631, -inf
    %v777 = vmax.f32 %v773, %v776
    %v778 = vsel %vm658, %v636, -inf
    %v779 = vmax.f32 %v775, %v778
    %v780 = vsel %vm658, %v639, -inf
    %v781 = vmax.f32 %v777, %v780
    %v782 = vsel %vm658, %v644, -inf
    %v783 = vmax.f32 %v779, %v782
    %v784 = vsel %vm658, %v647, -inf
    %v785 = vmax.f32 %v781, %v784
    %v786 = vsel %vm658, %v652, -inf
    %v787 = vmax.f32 %v783, %v786
    %v788 = vsel %vm658, %v655, -inf
    %v789 = vmax.f32 %v785, %v788
    %v790 = vmax.f32 %v787, %v789
    %v791 = vrot.slane %v790, 4
    %v792 = vmax.f32 %v790, %v791
    %v793 = vrot.slane %v792, 2
    %v794 = vmax.f32 %v792, %v793
    %v795 = vrot.slane %v794, 1
    %v796 = vmax.f32 %v794, %v795
    %v797 = vld [vmem:[%s2] sm:$0x1]
    %v799 = vlaneseq
    %v800 = vshrl.u32 %v799, 7
    %v801 = vsub.s32 0, %v800
    %v802 = vrot.slane %v797, %v801
    %v804 = vadd.f32 %v727, %v802
    %v805 = vadd.f32 %v796, %v802
    %v806 = vmax.f32 %v804, 0.0
    %v807 = vmax.f32 %v805, 0.0
    %v808 = vld [vmem:[%s3] sm:$0xff]
    %v809 = vld [vmem:[%s3 + $0x8] sm:$0xff]
    %v810 = vld [vmem:[%s3 + $0x10] sm:$0xff]
    %v811 = vld [vmem:[%s3 + $0x18] sm:$0xff]
    %v812 = vld [vmem:[%s3 + $0x20] sm:$0xff]
    %v813 = vld [vmem:[%s3 + $0x28] sm:$0xff]
    %v814 = vld [vmem:[%s3 + $0x30] sm:$0xff]
    %v815 = vld [vmem:[%s3 + $0x38] sm:$0xff]
    %v816 = vld [vmem:[%s3 + $0x40] sm:$0xff]
    %v817 = vld [vmem:[%s3 + $0x48] sm:$0xff]
    %v818 = vld [vmem:[%s3 + $0x50] sm:$0xff]
    %v819 = vld [vmem:[%s3 + $0x58] sm:$0xff]
    %v820 = vld [vmem:[%s3 + $0x60] sm:$0xff]
    %v821 = vld [vmem:[%s3 + $0x68] sm:$0xff]
    %v822 = vld [vmem:[%s3 + $0x70] sm:$0xff]
    %v823 = vld [vmem:[%s3 + $0x78] sm:$0xff]
    %v824 = vld [vmem:[%s3 + $0x80] sm:$0xff]
    %v825 = vld [vmem:[%s3 + $0x88] sm:$0xff]
    %v826 = vld [vmem:[%s3 + $0x90] sm:$0xff]
    %v827 = vld [vmem:[%s3 + $0x98] sm:$0xff]
    %v828 = vld [vmem:[%s3 + $0xa0] sm:$0xff]
    %v829 = vld [vmem:[%s3 + $0xa8] sm:$0xff]
    %v830 = vld [vmem:[%s3 + $0xb0] sm:$0xff]
    %v831 = vld [vmem:[%s3 + $0xb8] sm:$0xff]
    %v832 = vld [vmem:[%s3 + $0xc0] sm:$0xff]
    %v833 = vld [vmem:[%s3 + $0xc8] sm:$0xff]
    %v834 = vld [vmem:[%s3 + $0xd0] sm:$0xff]
    %v835 = vld [vmem:[%s3 + $0xd8] sm:$0xff]
    %v836 = vld [vmem:[%s3 + $0xe0] sm:$0xff]
    %v837 = vld [vmem:[%s3 + $0xe8] sm:$0xff]
    %v838 = vld [vmem:[%s3 + $0xf0] sm:$0xff]
    %v839 = vld [vmem:[%s3 + $0xf8] sm:$0xff]
    %v840 = vld [vmem:[%s4] sm:$0xf]
    %v842 = vlaneseq
    %v843 = vshrl.u32 %v842, 7
    %v844 = vsub.s32 0, %v843
    %v845 = vrot.slane %v840, %v844
    %v846 = vlaneseq
    %v847 = vshrl.u32 %v846, 7
    %v848 = vsub.s32 1, %v847
    %v849 = vrot.slane %v840, %v848
    %v850 = vlaneseq
    %v851 = vshrl.u32 %v850, 7
    %v852 = vsub.s32 2, %v851
    %v853 = vrot.slane %v840, %v852
    %v854 = vlaneseq
    %v855 = vshrl.u32 %v854, 7
    %v856 = vsub.s32 3, %v855
    %v857 = vrot.slane %v840, %v856
    %v864 = vrot.slane %v807, 7
    %vm865 = vcmask 1041409
    %v866 = vsel %vm865, %v864, %v806
    %v867 = vsel %vm658, %v866, 0
    %869 = vmatprep.subr.mxu0 %v809
    %870 = vmatpush1.msra.mxu0 %v808
    %871 = vmatprep.subr.mxu0 %v813
    %872 = vmatpush1.msra.mxu0 %v812
    %873 = vmatprep.subr.mxu0 %v817
    %874 = vmatpush1.msra.mxu0 %v816
    %875 = vmatprep.subr.mxu0 %v821
    %876 = vmatpush1.msra.mxu0 %v820
    %877 = vmatprep.subr.mxu0 %v825
    %878 = vmatpush1.msra.mxu0 %v824
    %879 = vmatprep.subr.mxu0 %v829
    %880 = vmatpush1.msra.mxu0 %v828
    %881 = vmatprep.subr.mxu0 %v833
    %882 = vmatpush1.msra.mxu0 %v832
    %883 = vmatprep.subr.mxu0 %v837
    %884 = vmatpush1.msra.mxu0 %v836
    %885 = vmatprep.subr.mxu0 0.0
    %886 = vmatpush1.msra.mxu0 0.0
    %887 = vmatprep.subr.mxu0 0.0
    %888 = vmatpush1.msra.mxu0 0.0
    %889 = vmatprep.subr.mxu0 0.0
    %890 = vmatpush1.msra.mxu0 0.0
    %891 = vmatprep.subr.mxu0 0.0
    %892 = vmatpush1.msra.mxu0 0.0
    %893 = vmatprep.subr.mxu0 0.0
    %894 = vmatpush1.msra.mxu0 0.0
    %895 = vmatprep.subr.mxu0 0.0
    %896 = vmatpush1.msra.mxu0 0.0
    %897 = vmatprep.subr.mxu0 0.0
    %898 = vmatpush1.msra.mxu0 0.0
    %899 = vmatprep.subr.mxu0 0.0
    %900 = vmatpush1.msra.mxu0 0.0
    %901 = vmatprep.subr.mxu0 0.0
    %902 = vmatpush1.msra.mxu0 0.0
    %903 = vmatprep.subr.mxu0 0.0
    %904 = vmatpush1.msra.mxu0 0.0
    %905 = vmatprep.subr.mxu0 0.0
    %906 = vmatpush1.msra.mxu0 0.0
    %907 = vmatprep.subr.mxu0 0.0
    %908 = vmatpush1.msra.mxu0 0.0
    %909 = vmatprep.subr.mxu0 0.0
    %910 = vmatpush1.msra.mxu0 0.0
    %911 = vmatprep.subr.mxu0 0.0
    %912 = vmatpush1.msra.mxu0 0.0
    %913 = vmatprep.subr.mxu0 0.0
    %914 = vmatpush1.msra.mxu0 0.0
    %915 = vmatprep.subr.mxu0 0.0
    %916 = vmatpush1.msra.mxu0 0.0
    %917 = vmatprep.subr.mxu0 0.0
    %918 = vmatpush1.msra.mxu0 0.0
    %919 = vmatprep.subr.mxu0 0.0
    %920 = vmatpush1.msra.mxu0 0.0
    %921 = vmatprep.subr.mxu0 0.0
    %922 = vmatpush1.msra.mxu0 0.0
    %923 = vmatprep.subr.mxu0 0.0
    %924 = vmatpush1.msra.mxu0 0.0
    %925 = vmatprep.subr.mxu0 0.0
    %926 = vmatpush1.msra.mxu0 0.0
    %927 = vmatprep.subr.mxu0 0.0
    %928 = vmatpush1.msra.mxu0 0.0
    %929 = vmatprep.subr.mxu0 0.0
    %930 = vmatpush1.msra.mxu0 0.0
    %931 = vmatprep.subr.mxu0 0.0
    %932 = vmatpush1.msra.mxu0 0.0
    %933 = vmatprep.mubr.f32.mxu0 0.0
    %934 = vmatmul.mubr.f32.gmra.mrb[0].mxu0 %v867
    %v935 = vpop.f32.mrb[0].mxu0
    %v936 = vadd.f32 %v845, %v935
    %v937 = vpop.f32.mrb[0].mxu0
    %v938 = vadd.f32 %v849, %v937
    %939 = vdwg.mxu0
    %940 = vmatprep.subr.mxu0 %v811
    %941 = vmatpush1.msra.mxu0 %v810
    %942 = vmatprep.subr.mxu0 %v815
    %943 = vmatpush1.msra.mxu0 %v814
    %944 = vmatprep.subr.mxu0 %v819
    %945 = vmatpush1.msra.mxu0 %v818
    %946 = vmatprep.subr.mxu0 %v823
    %947 = vmatpush1.msra.mxu0 %v822
    %948 = vmatprep.subr.mxu0 %v827
    %949 = vmatpush1.msra.mxu0 %v826
    %950 = vmatprep.subr.mxu0 %v831
    %951 = vmatpush1.msra.mxu0 %v830
    %952 = vmatprep.subr.mxu0 %v835
    %953 = vmatpush1.msra.mxu0 %v834
    %954 = vmatprep.subr.mxu0 %v839
    %955 = vmatpush1.msra.mxu0 %v838
    %956 = vmatprep.subr.mxu0 0.0
    %957 = vmatpush1.msra.mxu0 0.0
    %958 = vmatprep.subr.mxu0 0.0
    %959 = vmatpush1.msra.mxu0 0.0
    %960 = vmatprep.subr.mxu0 0.0
    %961 = vmatpush1.msra.mxu0 0.0
    %962 = vmatprep.subr.mxu0 0.0
    %963 = vmatpush1.msra.mxu0 0.0
    %964 = vmatprep.subr.mxu0 0.0
    %965 = vmatpush1.msra.mxu0 0.0
    %966 = vmatprep.subr.mxu0 0.0
    %967 = vmatpush1.msra.mxu0 0.0
    %968 = vmatprep.subr.mxu0 0.0
    %969 = vmatpush1.msra.mxu0 0.0
    %970 = vmatprep.subr.mxu0 0.0
    %971 = vmatpush1.msra.mxu0 0.0
    %972 = vmatprep.subr.mxu0 0.0
    %973 = vmatpush1.msra.mxu0 0.0
    %974 = vmatprep.subr.mxu0 0.0
    %975 = vmatpush1.msra.mxu0 0.0
    %976 = vmatprep.subr.mxu0 0.0
    %977 = vmatpush1.msra.mxu0 0.0
    %978 = vmatprep.subr.mxu0 0.0
    %979 = vmatpush1.msra.mxu0 0.0
    %980 = vmatprep.subr.mxu0 0.0
    %981 = vmatpush1.msra.mxu0 0.0
    %982 = vmatprep.subr.mxu0 0.0
    %983 = vmatpush1.msra.mxu0 0.0
    %984 = vmatprep.subr.mxu0 0.0
    %985 = vmatpush1.msra.mxu0 0.0
    %986 = vmatprep.subr.mxu0 0.0
    %987 = vmatpush1.msra.mxu0 0.0
    %988 = vmatprep.subr.mxu0 0.0
    %989 = vmatpush1.msra.mxu0 0.0
    %990 = vmatprep.subr.mxu0 0.0
    %991 = vmatpush1.msra.mxu0 0.0
    %992 = vmatprep.subr.mxu0 0.0
    %993 = vmatpush1.msra.mxu0 0.0
    %994 = vmatprep.subr.mxu0 0.0
    %995 = vmatpush1.msra.mxu0 0.0
    %996 = vmatprep.subr.mxu0 0.0
    %997 = vmatpush1.msra.mxu0 0.0
    %998 = vmatprep.subr.mxu0 0.0
    %999 = vmatpush1.msra.mxu0 0.0
    %1000 = vmatprep.subr.mxu0 0.0
    %1001 = vmatpush1.msra.mxu0 0.0
    %1002 = vmatprep.subr.mxu0 0.0
    %1003 = vmatpush1.msra.mxu0 0.0
    %1004 = vmatprep.mubr.f32.mxu0 0.0
    %1005 = vmatmul.mubr.f32.gmra.mrb[0].mxu0 %v867
    %v1006 = vpop.f32.mrb[0].mxu0
    %v1007 = vadd.f32 %v853, %v1006
    %v1008 = vpop.f32.mrb[0].mxu0
    %v1009 = vadd.f32 %v857, %v1008
    %1010 = vdwg.mxu0
    %1011 = vst [vmem:[#allocation2] sm:$0x3] %v936
    %v1012 = vmul.f32 %v938, 0.33333334
    %v1013 = vmul.f32 %v1009, 0.33333334
    %v1014 = vsel %vm365, %v1012, -inf
    %1015 = vmax.xlane.f32.xlu0 %v1014
    %v1016 = vpop.xlane.xlu0 %1015
    %v1017 = vsel %vm365, %v1013, -inf
    %1018 = vmax.xlane.f32.xlu0 %v1017
    %v1019 = vpop.xlane.xlu0 %1018
    %v1020 = vsub.f32 %v1012, %v1016
    %v1021 = vmul.f32 %v1020, 1.442695
    %v1022 = vpow.pop %v1021
    %v1023 = vsel %vm365, %v1022, 0.0
    %1024 = vadd.xlane.f32.xlu0 %v1023
    %v1025 = vpop.xlane.xlu0 %1024
    %v1026 = vlog2.pop %v1025
    %v1027 = vmul.f32 %v1026, 0.6931472
    %v1028 = vsub.f32 %v1020, %v1027
    %v1029 = vsub.f32 %v1013, %v1019
    %v1030 = vmul.f32 %v1029, 1.442695
    %v1031 = vpow.pop %v1030
    %v1032 = vsel %vm365, %v1031, 0.0
    %1033 = vadd.xlane.f32.xlu0 %v1032
    %v1034 = vpop.xlane.xlu0 %1033
    %v1035 = vlog2.pop %v1034
    %v1036 = vmul.f32 %v1035, 0.6931472
    %v1037 = vsub.f32 %v1029, %v1036
    %v1038 = vmul.f32 %v1037, 1.442695
    %v1039 = vpow.pop %v1038
    %v1040 = vsub.f32 %v1037, %v1028
    %v1041 = vmul.f32 %v1039, %v1040
    %v1042 = vsel %vm365, %v1041, 0.0
    %1043 = vadd.xlane.f32.xlu0 %v1042
    %v1044 = vpop.xlane.xlu0 %1043
    %v1045 = vrot.slane %v1044, 4
    %v1046 = vadd.f32 %v1044, %v1045
    %v1047 = vrot.slane %v1046, 2
    %v1048 = vadd.f32 %v1046, %v1047
    %v1049 = vrot.slane %v1048, 1
    %v1050 = vadd.f32 %v1048, %v1049
    %s1051 = vtos %v1050
    %v1052 = vmul.f32 %v936, 0.33333334
    %v1053 = vmul.f32 %v1007, 0.33333334
    %v1054 = vmin.f32 %v1052, 0.0
    %v1055 = vand.u32 2147483647, %v1052
    %v1056 = vsub.f32 0.0, %v1055
    %v1057 = vmul.f32 %v1056, 1.442695
    %v1058 = vpow.pop %v1057
    %v1059 = vadd.f32 %v1058, 1.0
    %v1060 = vlog2.pop %v1059
    %v1061 = vmul.f32 %v1060, 0.6931472
    %v1062 = vmul.f32 -0.5, %v1058
    %v1063 = vadd.f32 %v1062, 1.0
    %v1064 = vmul.f32 %v1063, %v1058
    %v1065 = vand.u32 2147483647, %v1058
    %vm1066 = vcmp.lt.f32.partialorder %v1065, 0.0004427343
    %v1067 = vsel %vm1066, %v1064, %v1061
    %v1068 = vsub.f32 %v1054, %v1067
    %v1069 = vsub.f32 0.0, %v1052
    %v1070 = vmin.f32 %v1069, 0.0
    %v1071 = vand.u32 2147483647, %v1069
    %v1072 = vsub.f32 0.0, %v1071
    %v1073 = vmul.f32 %v1072, 1.442695
    %v1074 = vpow.pop %v1073
    %v1075 = vadd.f32 %v1074, 1.0
    %v1076 = vlog2.pop %v1075
    %v1077 = vmul.f32 %v1076, 0.6931472
    %v1078 = vmul.f32 -0.5, %v1074
    %v1079 = vadd.f32 %v1078, 1.0
    %v1080 = vmul.f32 %v1079, %v1074
    %v1081 = vand.u32 2147483647, %v1074
    %vm1082 = vcmp.lt.f32.partialorder %v1081, 0.0004427343
    %v1083 = vsel %vm1082, %v1080, %v1077
    %v1084 = vsub.f32 %v1070, %v1083
    %v1085 = vmin.f32 %v1053, 0.0
    %v1086 = vand.u32 2147483647, %v1053
    %v1087 = vsub.f32 0.0, %v1086
    %v1088 = vmul.f32 %v1087, 1.442695
    %v1089 = vpow.pop %v1088
    %v1090 = vadd.f32 %v1089, 1.0
    %v1091 = vlog2.pop %v1090
    %v1092 = vmul.f32 %v1091, 0.6931472
    %v1093 = vmul.f32 -0.5, %v1089
    %v1094 = vadd.f32 %v1093, 1.0
    %v1095 = vmul.f32 %v1094, %v1089
    %v1096 = vand.u32 2147483647, %v1089
    %vm1097 = vcmp.lt.f32.partialorder %v1096, 0.0004427343
    %v1098 = vsel %vm1097, %v1095, %v1092
    %v1099 = vsub.f32 %v1085, %v1098
    %v1100 = vsub.f32 0.0, %v1053
    %v1101 = vmin.f32 %v1100, 0.0
    %v1102 = vand.u32 2147483647, %v1100
    %v1103 = vsub.f32 0.0, %v1102
    %v1104 = vmul.f32 %v1103, 1.442695
    %v1105 = vpow.pop %v1104
    %v1106 = vadd.f32 %v1105, 1.0
    %v1107 = vlog2.pop %v1106
    %v1108 = vmul.f32 %v1107, 0.6931472
    %v1109 = vmul.f32 -0.5, %v1105
    %v1110 = vadd.f32 %v1109, 1.0
    %v1111 = vmul.f32 %v1110, %v1105
    %v1112 = vand.u32 2147483647, %v1105
    %vm1113 = vcmp.lt.f32.partialorder %v1112, 0.0004427343
    %v1114 = vsel %vm1113, %v1111, %v1108
    %v1115 = vsub.f32 %v1101, %v1114
    %v1116 = vmul.f32 %v1099, 1.442695
    %v1117 = vpow.pop %v1116
    %v1118 = vmul.f32 %v1115, 1.442695
    %v1119 = vpow.pop %v1118
    %v1120 = vsub.f32 %v1099, %v1068
    %v1121 = vmul.f32 %v1117, %v1120
    %v1122 = vsel %vm365, %v1121, 0.0
    %1123 = vadd.xlane.f32.xlu0 %v1122
    %v1124 = vpop.xlane.xlu0 %1123
    %v1125 = vrot.slane %v1124, 4
    %v1126 = vadd.f32 %v1124, %v1125
    %v1127 = vrot.slane %v1126, 2
    %v1128 = vadd.f32 %v1126, %v1127
    %v1129 = vrot.slane %v1128, 1
    %v1130 = vadd.f32 %v1128, %v1129
    %s1131 = vtos %v1130
    %v1132 = vsub.f32 %v1115, %v1084
    %v1133 = vmul.f32 %v1119, %v1132
    %v1134 = vsel %vm365, %v1133, 0.0
    %1135 = vadd.xlane.f32.xlu0 %v1134
    %v1136 = vpop.xlane.xlu0 %1135
    %v1137 = vrot.slane %v1136, 4
    %v1138 = vadd.f32 %v1136, %v1137
    %v1139 = vrot.slane %v1138, 2
    %v1140 = vadd.f32 %v1138, %v1139
    %v1141 = vrot.slane %v1140, 1
    %v1142 = vadd.f32 %v1140, %v1141
    %s1143 = vtos %v1142
    %s1144 = smul.f32 %s1051, 9.0
    %s1145 = sadd.f32 %s1131, %s1143
    %s1146 = smul.f32 %s1145, 0.5
    %s1147 = smul.f32 %s1146, 9.0
    %v1148 = vrcp.pop 20.0
    %s1149 = vtos %v1148
    %s1150 = smul.f32 %s1147, %s1149
    %s1151 = sadd.f32 %s1144, %s1150
    %s1152 = smul.f32 %s1151, 0.5
    %v1153 = vstv %s1152
    %1154 = vst [vmem:[%s6] sm:$0xff] %v1153
    // Predicated region
    $region22: #{selective_fc_kd_forward.1} parent=1 // pred_check
      _
    $region23: #{selective_fc_kd_forward.1} parent=1 // pred_check_branch
      %1156 = sbr.rel (0) target = $region25
    $region24: #{selective_fc_kd_forward.1} parent=1 // pred_region
      %s1158 = ssub.s32 32, 32
      %1159 = vsyncadd [#allocation3], %s1158
      %s1161 = sshll.u32 [#allocation2], 4
      %s1162 = int_to_ptr.vmem [resolvable:$true] %s1161
      %1164 = dma.vmem_to_hbm [thread:$0]  %s1162, 32, %s5, [#allocation3]
    $region25: #{selective_fc_kd_forward.1} parent=1 // pred_fallthru
      _
    // Predicated region
    $region26: #{selective_fc_kd_forward.1} parent=1 // pred_check
      _
    $region27: #{selective_fc_kd_forward.1} parent=1 // pred_check_branch
      %1166 = sbr.rel (0) target = $region29
    $region28: #{selective_fc_kd_forward.1} parent=1 // pred_region
      _
    $region29: #{selective_fc_kd_forward.1} parent=1 // pred_fallthru
      _
    // Predicated region
    $region30: #{selective_fc_kd_forward.1} parent=1 // pred_check
      _
    $region31: #{selective_fc_kd_forward.1} parent=1 // pred_check_branch
      %1168 = sbr.rel (0) target = $region33
    $region32: #{selective_fc_kd_forward.1} parent=1 // pred_region
      %1169 = dma.done [#allocation3], 32
    $region33: #{selective_fc_kd_forward.1} parent=1 // pred_fallthru
      _
    // Predicated region
    $region34: #{selective_fc_kd_forward.1} parent=1 // pred_check
      _
    $region35: #{selective_fc_kd_forward.1} parent=1 // pred_check_branch
      %1171 = sbr.rel (0) target = $region37
    $region36: #{selective_fc_kd_forward.1} parent=1 // pred_region
      _
    $region37: #{selective_fc_kd_forward.1} parent=1 // pred_fallthru
      _
    %1172 = vsyncpa [#allocation3], 1

</llo_original>
